<compile_context>
chip_gen: v7x
topology: tpu7x:2x2x1
jax: 0.10.0
libtpu: 0.0.40
codegen_flags: <defaults>
</compile_context>

<pallas_src>
import jax
import jax.numpy as jnp
from jax.experimental import pallas as pl
from jax.experimental.pallas import tpu as pltpu


def _neural_sutra_kernel(params_ref, x_ref, o_ref):
    # params_ref: (17,) f32 in SMEM, packed as
    #   [w1[0,0..3], w1[1,0..3], b1[0..3], w2[0..3,0], b2]
    # x_ref: (2, TILE_ROWS, 128) f32 in VMEM  (feature-major; batch on sublanes+lanes)
    # o_ref: (TILE_ROWS, 128)    f32 in VMEM
    x0 = x_ref[0]                      # (TILE_ROWS, 128) -- full vregs
    x1 = x_ref[1]

    y = jnp.zeros_like(x0)
    for j in range(4):                 # unrolled over the 4 hidden units (VPU FMA, no MXU)
        w1_0j = params_ref[j]
        w1_1j = params_ref[4 + j]
        b1_j = params_ref[8 + j]
        w2_j = params_ref[12 + j]
        h_j = jnp.tanh(w1_0j * x0 + w1_1j * x1 + b1_j)
        y = y + w2_j * h_j
    y = y + params_ref[16]

    # Exact sigmoid with a single EUP op: sigmoid(y) = 0.5 * tanh(0.5 * y) + 0.5.
    o_ref[...] = 0.5 * jnp.tanh(0.5 * y) + 0.5


def neural_sutra_forward(x, w1, b1, w2, b2, *, tile_rows=2048):
    """x: (B, 2) float. w1: (2, 4), b1: (4,), w2: (4, 1), b2: (1,). Returns (B, 1) f32."""
    B = x.shape[0]

    # Pack the 17 weight/bias scalars into one flat SMEM-resident vector.
    params = jnp.concatenate(
        [w1.reshape(-1), b1.reshape(-1), w2.reshape(-1), b2.reshape(-1)]
    ).astype(jnp.float32)                                    # (17,)

    # Fold the batch onto (rows, 128): rows on sublanes, 128 on lanes.
    rows = pl.cdiv(B, 128)
    rows8 = ((rows + 7) // 8) * 8
    # Tile: multiple of 8 rows, >= 8; cap keeps double-buffered f32 tiles
    # (~12 B/element in+out) well inside every generation's VMEM budget.
    tile_rows = max(8, (min(tile_rows, 4096) // 8) * 8)
    tile_rows = min(tile_rows, rows8)
    rows_pad = ((rows8 + tile_rows - 1) // tile_rows) * tile_rows
    b_pad = rows_pad * 128

    # Feature-major + pad + free reshape into the folded layout.
    x_t = x.astype(jnp.float32).T                            # (2, B)
    if b_pad != B:
        x_t = jnp.pad(x_t, ((0, 0), (0, b_pad - B)))         # zero-pad the batch tail
    x_t = x_t.reshape(2, rows_pad, 128)

    # Double-buffered input (2 rows-planes) + double-buffered output + headroom.
    tile_bytes = tile_rows * 128 * 4
    vmem_limit = min(2 * 3 * tile_bytes + (16 << 20), 48 << 20)

    out = pl.pallas_call(
        _neural_sutra_kernel,
        out_shape=jax.ShapeDtypeStruct((rows_pad, 128), jnp.float32),
        grid_spec=pltpu.PrefetchScalarGridSpec(
            num_scalar_prefetch=0,
            grid=(rows_pad // tile_rows,),
            in_specs=[
                pl.BlockSpec(memory_space=pltpu.MemorySpace.SMEM),       # packed params
                pl.BlockSpec((2, tile_rows, 128), lambda i: (0, i, 0)),  # x tile
            ],
            out_specs=pl.BlockSpec((tile_rows, 128), lambda i: (i, 0)),
        ),
        compiler_params=pltpu.CompilerParams(
            dimension_semantics=("parallel",),   # v7x: shard batch tiles across 2 TCs
            vmem_limit_bytes=vmem_limit,
        ),
        cost_estimate=pl.CostEstimate(
            flops=26 * b_pad, transcendentals=5 * b_pad, bytes_accessed=12 * b_pad
        ),
    )(params, x_t)

    # (rows_pad, 128) -> drop padding -> (B, 1), matching the torch forward.
    # TODO(synk): consumers that can take the folded (rows, 128) layout directly
    # should do so to skip this relayout.
    return out.reshape(-1)[:B].reshape(B, 1)


def init_params(key):
    """Deterministic init mimicking nn.Linear's U(-1/sqrt(fan_in), 1/sqrt(fan_in))."""
    k1, k2, k3, k4 = jax.random.split(key, 4)
    bound1 = 1.0 / jnp.sqrt(2.0)
    bound2 = 1.0 / jnp.sqrt(4.0)
    # Stored already transposed relative to PyTorch: (in_features, out_features).
    w1 = jax.random.uniform(k1, (2, 4), jnp.float32, -bound1, bound1)
    b1 = jax.random.uniform(k2, (4,), jnp.float32, -bound1, bound1)
    w2 = jax.random.uniform(k3, (4, 1), jnp.float32, -bound2, bound2)
    b2 = jax.random.uniform(k4, (1,), jnp.float32, -bound2, bound2)
    return w1, b1, w2, b2


if __name__ == "__main__":
    key = jax.random.PRNGKey(0)
    k_params, k_x = jax.random.split(key)

    w1, b1, w2, b2 = init_params(k_params)

    B = 200                                             # not a multiple of 128: exercises tail padding
    x = jax.random.uniform(k_x, (B, 2), jnp.float32)    # nonnegative inputs, as in the dashboard

    out = neural_sutra_forward(x, w1, b1, w2, b2)       # small B -> one 8x128 tile, grid=(1,)
    out = jax.block_until_ready(out)

    # Reference check in plain JAX (same math as the PyTorch forward).
    ref = jax.nn.sigmoid(jnp.tanh(x @ w1 + b1) @ w2 + b2)
    assert out.shape == (B, 1)
    assert jnp.allclose(out, ref, atol=1e-4, rtol=1e-4), float(jnp.max(jnp.abs(out - ref)))

    print("KERNEL_OK")
</pallas_src>

<mosaic_0001>
module attributes {stable_mosaic.version = 11 : i64} {
  func.func @_neural_sutra_kernel(%arg0: i32, %arg1: memref<17xf32, #tpu.memory_space<smem>>, %arg2: memref<2x8x128xf32, #tpu.memory_space<vmem>>, %arg3: memref<8x128xf32, #tpu.memory_space<vmem>>) attributes {dimension_semantics = [#tpu.dimension_semantics<parallel>], iteration_bounds = array<i64: 1>, scalar_prefetch = 0 : i64, scratch_operands = 0 : i64, tpu.core_type = #tpu.core_type<tc>, window_params = [{transform_indices = @transform_0, window_bounds = array<i64: 17>}, {transform_indices = @transform_1, window_bounds = array<i64: 2, 8, 128>}, {transform_indices = @transform_2, window_bounds = array<i64: 8, 128>}]} {
    %c0 = arith.constant 0 : index
    %c0_0 = arith.constant 0 : index
    %c0_1 = arith.constant 0 : index
    %0 = vector.load %arg2[%c0, %c0_0, %c0_1] : memref<2x8x128xf32, #tpu.memory_space<vmem>>, vector<1x8x128xf32>
    %1 = vector.shape_cast %0 : vector<1x8x128xf32> to vector<8x128xf32>
    %c1 = arith.constant 1 : index
    %c0_2 = arith.constant 0 : index
    %c0_3 = arith.constant 0 : index
    %2 = vector.load %arg2[%c1, %c0_2, %c0_3] : memref<2x8x128xf32, #tpu.memory_space<vmem>>, vector<1x8x128xf32>
    %3 = vector.shape_cast %2 : vector<1x8x128xf32> to vector<8x128xf32>
    %cst = arith.constant 0.000000e+00 : f32
    %4 = vector.broadcast %cst : f32 to vector<8x128xf32>
    %c0_4 = arith.constant 0 : index
    %5 = memref.load %arg1[%c0_4] : memref<17xf32, #tpu.memory_space<smem>>
    %c4 = arith.constant 4 : index
    %6 = memref.load %arg1[%c4] : memref<17xf32, #tpu.memory_space<smem>>
    %c8 = arith.constant 8 : index
    %7 = memref.load %arg1[%c8] : memref<17xf32, #tpu.memory_space<smem>>
    %c12 = arith.constant 12 : index
    %8 = memref.load %arg1[%c12] : memref<17xf32, #tpu.memory_space<smem>>
    %9 = vector.broadcast %5 : f32 to vector<8x128xf32>
    %10 = arith.mulf %9, %1 : vector<8x128xf32>
    %11 = vector.broadcast %6 : f32 to vector<8x128xf32>
    %12 = arith.mulf %11, %3 : vector<8x128xf32>
    %13 = arith.addf %10, %12 : vector<8x128xf32>
    %14 = vector.broadcast %7 : f32 to vector<8x128xf32>
    %15 = arith.addf %13, %14 : vector<8x128xf32>
    %16 = math.tanh %15 : vector<8x128xf32>
    %17 = vector.broadcast %8 : f32 to vector<8x128xf32>
    %18 = arith.mulf %17, %16 : vector<8x128xf32>
    %19 = arith.addf %4, %18 : vector<8x128xf32>
    %c1_5 = arith.constant 1 : index
    %20 = memref.load %arg1[%c1_5] : memref<17xf32, #tpu.memory_space<smem>>
    %c5 = arith.constant 5 : index
    %21 = memref.load %arg1[%c5] : memref<17xf32, #tpu.memory_space<smem>>
    %c9 = arith.constant 9 : index
    %22 = memref.load %arg1[%c9] : memref<17xf32, #tpu.memory_space<smem>>
    %c13 = arith.constant 13 : index
    %23 = memref.load %arg1[%c13] : memref<17xf32, #tpu.memory_space<smem>>
    %24 = vector.broadcast %20 : f32 to vector<8x128xf32>
    %25 = arith.mulf %24, %1 : vector<8x128xf32>
    %26 = vector.broadcast %21 : f32 to vector<8x128xf32>
    %27 = arith.mulf %26, %3 : vector<8x128xf32>
    %28 = arith.addf %25, %27 : vector<8x128xf32>
    %29 = vector.broadcast %22 : f32 to vector<8x128xf32>
    %30 = arith.addf %28, %29 : vector<8x128xf32>
    %31 = math.tanh %30 : vector<8x128xf32>
    %32 = vector.broadcast %23 : f32 to vector<8x128xf32>
    %33 = arith.mulf %32, %31 : vector<8x128xf32>
    %34 = arith.addf %19, %33 : vector<8x128xf32>
    %c2 = arith.constant 2 : index
    %35 = memref.load %arg1[%c2] : memref<17xf32, #tpu.memory_space<smem>>
    %c6 = arith.constant 6 : index
    %36 = memref.load %arg1[%c6] : memref<17xf32, #tpu.memory_space<smem>>
    %c10 = arith.constant 10 : index
    %37 = memref.load %arg1[%c10] : memref<17xf32, #tpu.memory_space<smem>>
    %c14 = arith.constant 14 : index
    %38 = memref.load %arg1[%c14] : memref<17xf32, #tpu.memory_space<smem>>
    %39 = vector.broadcast %35 : f32 to vector<8x128xf32>
    %40 = arith.mulf %39, %1 : vector<8x128xf32>
    %41 = vector.broadcast %36 : f32 to vector<8x128xf32>
    %42 = arith.mulf %41, %3 : vector<8x128xf32>
    %43 = arith.addf %40, %42 : vector<8x128xf32>
    %44 = vector.broadcast %37 : f32 to vector<8x128xf32>
    %45 = arith.addf %43, %44 : vector<8x128xf32>
    %46 = math.tanh %45 : vector<8x128xf32>
    %47 = vector.broadcast %38 : f32 to vector<8x128xf32>
    %48 = arith.mulf %47, %46 : vector<8x128xf32>
    %49 = arith.addf %34, %48 : vector<8x128xf32>
    %c3 = arith.constant 3 : index
    %50 = memref.load %arg1[%c3] : memref<17xf32, #tpu.memory_space<smem>>
    %c7 = arith.constant 7 : index
    %51 = memref.load %arg1[%c7] : memref<17xf32, #tpu.memory_space<smem>>
    %c11 = arith.constant 11 : index
    %52 = memref.load %arg1[%c11] : memref<17xf32, #tpu.memory_space<smem>>
    %c15 = arith.constant 15 : index
    %53 = memref.load %arg1[%c15] : memref<17xf32, #tpu.memory_space<smem>>
    %54 = vector.broadcast %50 : f32 to vector<8x128xf32>
    %55 = arith.mulf %54, %1 : vector<8x128xf32>
    %56 = vector.broadcast %51 : f32 to vector<8x128xf32>
    %57 = arith.mulf %56, %3 : vector<8x128xf32>
    %58 = arith.addf %55, %57 : vector<8x128xf32>
    %59 = vector.broadcast %52 : f32 to vector<8x128xf32>
    %60 = arith.addf %58, %59 : vector<8x128xf32>
    %61 = math.tanh %60 : vector<8x128xf32>
    %62 = vector.broadcast %53 : f32 to vector<8x128xf32>
    %63 = arith.mulf %62, %61 : vector<8x128xf32>
    %64 = arith.addf %49, %63 : vector<8x128xf32>
    %c16 = arith.constant 16 : index
    %65 = memref.load %arg1[%c16] : memref<17xf32, #tpu.memory_space<smem>>
    %66 = vector.broadcast %65 : f32 to vector<8x128xf32>
    %67 = arith.addf %64, %66 : vector<8x128xf32>
    %cst_6 = arith.constant 5.000000e-01 : f32
    %68 = vector.broadcast %cst_6 : f32 to vector<8x128xf32>
    %69 = arith.mulf %68, %67 : vector<8x128xf32>
    %70 = math.tanh %69 : vector<8x128xf32>
    %cst_7 = arith.constant 5.000000e-01 : f32
    %71 = vector.broadcast %cst_7 : f32 to vector<8x128xf32>
    %72 = arith.mulf %71, %70 : vector<8x128xf32>
    %cst_8 = arith.constant 5.000000e-01 : f32
    %73 = vector.broadcast %cst_8 : f32 to vector<8x128xf32>
    %74 = arith.addf %72, %73 : vector<8x128xf32>
    %c0_9 = arith.constant 0 : index
    %c0_10 = arith.constant 0 : index
    %75 = vector.load %arg3[%c0_9, %c0_10] : memref<8x128xf32, #tpu.memory_space<vmem>>, vector<8x128xf32>
    tpu.vector_store %arg3[%c0_9, %c0_10], %74 {strides = array<i32>} : memref<8x128xf32, #tpu.memory_space<vmem>>, vector<8x128xf32>,
    return
  }
  func.func @transform_0(%arg0: i32) -> i32 {
    %c0_i32 = arith.constant 0 : i32
    %c0_i32_0 = arith.constant 0 : i32
    return %c0_i32 : i32
  }
  func.func @transform_1(%arg0: i32) -> (i32, i32, i32) {
    %c0_i32 = arith.constant 0 : i32
    %c0_i32_0 = arith.constant 0 : i32
    %c0_i32_1 = arith.constant 0 : i32
    return %c0_i32, %arg0, %c0_i32_0 : i32, i32, i32
  }
  func.func @transform_2(%arg0: i32) -> (i32, i32) {
    %c0_i32 = arith.constant 0 : i32
    %c0_i32_0 = arith.constant 0 : i32
    return %arg0, %c0_i32 : i32, i32
  }
}

</mosaic_0001>

<llo_original>
// kernel: tpu_custom_call.1
$region0: #{tpu_custom_call.1}
  #allocation0 [shape = 'u32[]', space=smem, size = 0x4, offset = 0x4, fixed_abs, tag = 'smem constant byte address 0x4 - core index']
  #allocation1 [shape = 'u32[144,128]{1,0:T(1,128)}', space=vmem, size = 0x12000, scoped, tag = 'internal scratch']
  %s0 = inlined_call_operand.hbm [shape: f32[17], index: 0, kind: input, shape index: {}]
  %s1 = inlined_call_operand.hbm [shape: f32[2,8,128], index: 1, kind: input, shape index: {}]
  %s2 = inlined_call_operand.hbm [shape: f32[8,128], index: 2, kind: output, shape index: {}]
  %s3 = sld [smem:[#allocation0]]
  $region26: #{tpu_custom_call.1} parent=0
    _
  %s5 = ssub.s32 1, %s3
  %s6 = scalar_select 0, %s5, %s3
  $region1: #{tpu_custom_call.1} parent=0
    #allocation2 [shape = 'u8[512]{0}', space=smem, size = 0x200, scoped, tag = 'input window, operand 0, single buffered']
    #allocation3 [shape = 's32[1]{0}', space=sflag, size = 0x4, scoped, tag = 'scoped memory for tpu_custom_call.1']
    #allocation4 [shape = 's32[1]{0}', space=sflag, size = 0x4, scoped, tag = 'scoped memory for tpu_custom_call.1']
    #allocation5 [shape = 's32[1]{0}', space=sflag, size = 0x4, scoped, tag = 'scoped memory for tpu_custom_call.1']
    #allocation6 [shape = 'u8[8192]{0}', space=vmem, size = 0x2000, scoped, tag = 'input window, operand 1, single buffered']
    #allocation7 [shape = 'u8[4096]{0}', space=vmem, size = 0x1000, scoped, tag = 'output window, operand 0, single buffered']
    %7 = vsyncpa [#allocation5], 0
    %8 = vsyncpa [#allocation3], 0
    %9 = vsyncpa [#allocation4], 0
    // Predicated region
    $region2: #{tpu_custom_call.1} parent=1 // pred_check
      _
    $region3: #{tpu_custom_call.1} parent=1 // pred_check_branch
      %11 = sbr.rel (0) target = $region5
    $region4: #{tpu_custom_call.1} parent=1 // pred_region
      %s13 = ssub.s32 16, 16
      %14 = vsyncadd [#allocation5], %s13
      %17 = dma.hbm_to_smem %s0, 16, [#allocation2], [#allocation5]
    $region5: #{tpu_custom_call.1} parent=1 // pred_fallthru
      _
    // Predicated region
    $region6: #{tpu_custom_call.1} parent=1 // pred_check
      _
    $region7: #{tpu_custom_call.1} parent=1 // pred_check_branch
      %19 = sbr.rel (0) target = $region9
    $region8: #{tpu_custom_call.1} parent=1 // pred_region
      %s21 = ssub.s32 256, 256
      %22 = vsyncadd [#allocation3], %s21
      %s23 = sshll.u32 [#allocation6], 4
      %s24 = int_to_ptr.vmem [resolvable:$true] %s23
      %29 = dma.hbm_to_vmem [thread:$0]  %s1, 256, %s24, [#allocation3], 128, 128, 8
    $region9: #{tpu_custom_call.1} parent=1 // pred_fallthru
      _
    // Predicated region
    $region10: #{tpu_custom_call.1} parent=1 // pred_check
      _
    $region11: #{tpu_custom_call.1} parent=1 // pred_check_branch
      %31 = sbr.rel (0) target = $region13
    $region12: #{tpu_custom_call.1} parent=1 // pred_region
      %32 = dma.done [#allocation5], 16
    $region13: #{tpu_custom_call.1} parent=1 // pred_fallthru
      _
    // Predicated region
    $region14: #{tpu_custom_call.1} parent=1 // pred_check
      _
    $region15: #{tpu_custom_call.1} parent=1 // pred_check_branch
      %34 = sbr.rel (0) target = $region17
    $region16: #{tpu_custom_call.1} parent=1 // pred_region
      %35 = dma.done [#allocation3], 256
    $region17: #{tpu_custom_call.1} parent=1 // pred_fallthru
      _
    %36 = sfence
    %v37 = vld [vmem:[#allocation6] sm:$0xff]
    %s38 = scalar_lea.vmem [#allocation6], 8
    %v39 = vld [vmem:[%s38] sm:$0xff]
    %s40 = sld [smem:[#allocation2]]
    %s41 = sld [smem:[#allocation2 + $0x4]]
    %s42 = sld [smem:[#allocation2 + $0x8]]
    %s43 = sld [smem:[#allocation2 + $0xc]]
    %v44 = vstv %s40
    %v45 = vmul.f32 %v44, %v37
    %v46 = vstv %s41
    %v47 = vmul.f32 %v46, %v39
    %v48 = vadd.f32 %v45, %v47
    %v49 = vstv %s42
    %v50 = vadd.f32 %v48, %v49
    %v51 = vtanh.pop %v50
    %v52 = vstv %s43
    %v53 = vmul.f32 %v52, %v51
    %v54 = vadd.f32 %v53, 0.0
    %s55 = sld [smem:[#allocation2 + $0x1]]
    %s56 = sld [smem:[#allocation2 + $0x5]]
    %s57 = sld [smem:[#allocation2 + $0x9]]
    %s58 = sld [smem:[#allocation2 + $0xd]]
    %v59 = vstv %s55
    %v60 = vmul.f32 %v59, %v37
    %v61 = vstv %s56
    %v62 = vmul.f32 %v61, %v39
    %v63 = vadd.f32 %v60, %v62
    %v64 = vstv %s57
    %v65 = vadd.f32 %v63, %v64
    %v66 = vtanh.pop %v65
    %v67 = vstv %s58
    %v68 = vmul.f32 %v67, %v66
    %v69 = vadd.f32 %v54, %v68
    %s70 = sld [smem:[#allocation2 + $0x2]]
    %s71 = sld [smem:[#allocation2 + $0x6]]
    %s72 = sld [smem:[#allocation2 + $0xa]]
    %s73 = sld [smem:[#allocation2 + $0xe]]
    %v74 = vstv %s70
    %v75 = vmul.f32 %v74, %v37
    %v76 = vstv %s71
    %v77 = vmul.f32 %v76, %v39
    %v78 = vadd.f32 %v75, %v77
    %v79 = vstv %s72
    %v80 = vadd.f32 %v78, %v79
    %v81 = vtanh.pop %v80
    %v82 = vstv %s73
    %v83 = vmul.f32 %v82, %v81
    %v84 = vadd.f32 %v69, %v83
    %s85 = sld [smem:[#allocation2 + $0x3]]
    %s86 = sld [smem:[#allocation2 + $0x7]]
    %s87 = sld [smem:[#allocation2 + $0xb]]
    %s88 = sld [smem:[#allocation2 + $0xf]]
    %v89 = vstv %s85
    %v90 = vmul.f32 %v89, %v37
    %v91 = vstv %s86
    %v92 = vmul.f32 %v91, %v39
    %v93 = vadd.f32 %v90, %v92
    %v94 = vstv %s87
    %v95 = vadd.f32 %v93, %v94
    %v96 = vtanh.pop %v95
    %v97 = vstv %s88
    %v98 = vmul.f32 %v97, %v96
    %v99 = vadd.f32 %v84, %v98
    %s100 = sld [smem:[#allocation2 + $0x10]]
    %v101 = vstv %s100
    %v102 = vadd.f32 %v99, %v101
    %v103 = vmul.f32 %v102, 0.5
    %v104 = vtanh.pop %v103
    %v105 = vmul.f32 %v104, 0.5
    %v106 = vadd.f32 %v105, 0.5
    %107 = vst [vmem:[#allocation7] sm:$0xff] %v106
    // Predicated region
    $region18: #{tpu_custom_call.1} parent=1 // pred_check
      _
    $region19: #{tpu_custom_call.1} parent=1 // pred_check_branch
      %109 = sbr.rel (0) target = $region21
    $region20: #{tpu_custom_call.1} parent=1 // pred_region
      %s111 = ssub.s32 128, 128
      %112 = vsyncadd [#allocation4], %s111
      %s114 = sshll.u32 [#allocation7], 4
      %s115 = int_to_ptr.vmem [resolvable:$true] %s114
      %117 = dma.vmem_to_hbm [thread:$0]  %s115, 128, %s2, [#allocation4]
    $region21: #{tpu_custom_call.1} parent=1 // pred_fallthru
      _
    // Predicated region
    $region22: #{tpu_custom_call.1} parent=1 // pred_check
      _
    $region23: #{tpu_custom_call.1} parent=1 // pred_check_branch
      %119 = sbr.rel (0) target = $region25
    $region24: #{tpu_custom_call.1} parent=1 // pred_region
      %120 = dma.done [#allocation4], 128
    $region25: #{tpu_custom_call.1} parent=1 // pred_fallthru
      _
    %121 = vsyncpa [#allocation3], 1
    %122 = vsyncpa [#allocation4], 1
    %123 = vsyncpa [#allocation5], 1

</llo_original>
